<compile_context>
chip_gen: v6e
topology: v6e:2x2x1
jax: 0.10.0
libtpu: 0.0.40
codegen_flags: <defaults>
</compile_context>

<pallas_src>
import functools

import jax
import jax.numpy as jnp
from jax.experimental import pallas as pl
from jax.experimental.pallas import tpu as pltpu


def _distill_partial_kernel(*refs, temperature, tile_c, num_cols, needs_mask,
                            compute_bce, compute_kl, use_bf16_eup):
    it = iter(refs)
    s_ref = next(it)
    t_ref = next(it) if compute_kl else None
    y_ref = next(it) if compute_bce else None
    out_ref = next(it)

    s = s_ref[...].astype(jnp.float32)          # (B, tile_c) student logits

    if needs_mask:
        # Column-level mask; only the last tile has any False lanes, and the
        # select is applied to (1, tile_c) vectors, so it is ~free everywhere.
        j = pl.program_id(0)
        col_ids = j * tile_c + jax.lax.broadcasted_iota(jnp.int32, (1, tile_c), 1)
        col_mask = col_ids < num_cols
    else:
        col_mask = None

    # EUP dtype: bf16 halves transcendental cost on v6e/v7x; accumulation stays f32.
    eup_dtype = jnp.bfloat16 if use_bf16_eup else jnp.float32

    bce_sum = jnp.float32(0.0)
    if compute_bce:
        y = y_ref[...].astype(jnp.float32)
        # stable BCE-with-logits: max(x,0) - x*y + log1p(exp(-|x|))
        tail = jnp.log1p(jnp.exp((-jnp.abs(s)).astype(eup_dtype))).astype(jnp.float32)
        bce = jnp.maximum(s, 0.0) - s * y + tail
        bce_col = jnp.sum(bce, axis=0, keepdims=True)          # (1, tile_c)
        if needs_mask:
            bce_col = jnp.where(col_mask, bce_col, 0.0)        # select, NaN-safe
        bce_sum = jnp.sum(bce_col)

    kl_sum = jnp.float32(0.0)
    if compute_kl:
        t = t_ref[...].astype(jnp.float32)
        inv_temp = jnp.float32(1.0 / temperature)
        s_scaled = s * inv_temp
        t_scaled = t * inv_temp
        # softmax / log_softmax over the batch axis (axis 0), as in the reference.
        s_shift = s_scaled - jnp.max(s_scaled, axis=0, keepdims=True)
        t_shift = t_scaled - jnp.max(t_scaled, axis=0, keepdims=True)

        e_s = jnp.exp(s_shift.astype(eup_dtype)).astype(jnp.float32)
        e_t = jnp.exp(t_shift.astype(eup_dtype)).astype(jnp.float32)
        z_s = jnp.sum(e_s, axis=0, keepdims=True)              # (1, tile_c)
        z_t = jnp.sum(e_t, axis=0, keepdims=True)              # (1, tile_c)
        cross = jnp.sum(e_t * (t_shift - s_shift), axis=0, keepdims=True)

        # sum_b p_t*(log p_t - log p_s) = cross / Z_t + log Z_s - log Z_t
        # (per-element divide eliminated; reciprocal only on a (1, tile_c) vector)
        kl_col = cross * pl.reciprocal(z_t, approx=False) + jnp.log(z_s) - jnp.log(z_t)
        if needs_mask:
            kl_col = jnp.where(col_mask, kl_col, 0.0)
        kl_sum = jnp.sum(kl_col)

    # Single lane-dense (8, 128) output slab per tile:
    # sublane 0 carries the BCE partial sum, sublane 1 the KL partial sum.
    row_ids = jax.lax.broadcasted_iota(jnp.int32, out_ref.shape, 1)
    out_ref[...] = jnp.where(row_ids == 0, bce_sum, kl_sum)


def _vmem_limit_bytes():
    try:
        cap = int(pltpu.get_tpu_info().vmem_capacity_bytes)
    except Exception:
        cap = 64 << 20                      # conservative: v7x per-TC VMEM
    # Leave ~24 MiB for Mosaic internal scratch + output double-buffers, and
    # never ask for more than 3/4 of capacity or 96 MiB.
    # -> ~40 MiB on v7x (64 MiB parts), 96 MiB on v5e/v6e (128 MiB parts).
    return max(16 << 20, min((cap * 3) // 4, cap - (24 << 20), 96 << 20))


def _pick_tile_c(batch, num_cols, itemsize_sum, tile_budget_bytes, max_tile_c):
    # Per class-column VMEM cost:
    #   * 2x double-buffered input DMA tiles (itemsize_sum bytes/elem), plus
    #   * ~6 live (B, tile_c) f32 temporaries inside the kernel
    #     (s/t/y upcasts, s_shift, t_shift, e_t / bce).
    bytes_per_col = 2 * batch * itemsize_sum + 6 * 4 * batch
    tile = tile_budget_bytes // max(bytes_per_col, 1)
    tile = max(128, (tile // 128) * 128)     # no fixed upper cap: budget decides
    if max_tile_c is not None:
        tile = min(tile, max(128, (max_tile_c // 128) * 128))
    if num_cols <= tile:
        if num_cols >= 256:
            # Force >= 2 tiles so the "parallel" grid axis shards across both
            # v7x TensorCores; extra grid-step overhead (~0.35 us) is negligible.
            half = -(-num_cols // 2)
            return max(128, ((half + 127) // 128) * 128)
        return num_cols                      # single full-width tile (covers C < 128 too)
    return tile


def distillation_loss(student_outputs, teacher_outputs, labels,
                      temperature=3.0, alpha=0.7, max_tile_c=None,
                      use_bf16_eup=False):
    assert student_outputs.shape == teacher_outputs.shape == labels.shape
    assert student_outputs.ndim == 2
    B, C = student_outputs.shape

    alpha = float(alpha)
    compute_bce = alpha != 1.0               # hard-loss weight (1 - alpha)
    compute_kl = alpha != 0.0                # soft-loss weight alpha

    # Only the streams we actually read count toward HBM/VMEM budgets.
    itemsize_sum = jnp.dtype(student_outputs.dtype).itemsize
    if compute_kl:
        itemsize_sum += jnp.dtype(teacher_outputs.dtype).itemsize
    if compute_bce:
        itemsize_sum += jnp.dtype(labels.dtype).itemsize

    vmem_limit = _vmem_limit_bytes()
    tile_c = _pick_tile_c(B, C, itemsize_sum, (vmem_limit * 2) // 3, max_tile_c)
    num_tiles = -(-C // tile_c)
    needs_mask = (num_tiles * tile_c) != C
    # TODO(synk): if B is so large that even (B, 128) tiles overflow VMEM, switch the
    # batch-axis softmax to an online (running max/sum) two-pass formulation over B tiles.
    # TODO(synk): for degenerate layouts (C < 128 or B % 8 != 0) a wrapper-side
    # transpose/reshape that fills lanes with the class axis would raise vreg occupancy.

    kernel = functools.partial(
        _distill_partial_kernel, temperature=float(temperature),
        tile_c=tile_c, num_cols=C, needs_mask=needs_mask,
        compute_bce=compute_bce, compute_kl=compute_kl,
        use_bf16_eup=bool(use_bf16_eup))

    trans_per_elem = (2 if compute_bce else 0) + (2 if compute_kl else 0)
    bytes_in = B * C * itemsize_sum
    bytes_out = num_tiles * 8 * 128 * 4
    cost = pl.CostEstimate(flops=20 * B * C,
                           transcendentals=trans_per_elem * B * C,
                           bytes_accessed=bytes_in + bytes_out)

    def in_spec():
        return pl.BlockSpec((B, tile_c), lambda j: (0, j))

    inputs = [student_outputs]
    in_specs = [in_spec()]
    if compute_kl:
        inputs.append(teacher_outputs)
        in_specs.append(in_spec())
    if compute_bce:
        inputs.append(labels)
        in_specs.append(in_spec())

    partials = pl.pallas_call(
        kernel,
        out_shape=jax.ShapeDtypeStruct((num_tiles, 8, 128), jnp.float32),
        grid_spec=pltpu.PrefetchScalarGridSpec(
            num_scalar_prefetch=0,
            grid=(num_tiles,),
            in_specs=in_specs,
            out_specs=pl.BlockSpec((1, 8, 128), lambda j: (j, 0, 0)),
        ),
        compiler_params=pltpu.CompilerParams(
            dimension_semantics=("parallel",),
            vmem_limit_bytes=int(vmem_limit)),
        cost_estimate=cost,
    )(*inputs)

    bce_sum = jnp.sum(partials[:, 0, 0])
    kl_sum = jnp.sum(partials[:, 1, 0])
    hard_loss = bce_sum / jnp.float32(B * C)          # BCEWithLogitsLoss mean
    soft_loss = kl_sum / jnp.float32(B)               # KLDiv 'batchmean'
    return ((1.0 - alpha) * hard_loss
            + alpha * soft_loss * jnp.float32(temperature) ** 2)


def _reference(student, teacher, labels, temperature=3.0, alpha=0.7):
    # pure-JAX reference mirroring the PyTorch module
    s = student.astype(jnp.float32)
    t = teacher.astype(jnp.float32)
    y = labels.astype(jnp.float32)
    hard = jnp.mean(jnp.maximum(s, 0.0) - s * y + jnp.log1p(jnp.exp(-jnp.abs(s))))
    log_p_s = jax.nn.log_softmax(s / temperature, axis=0)
    p_t = jax.nn.softmax(t / temperature, axis=0)
    soft = jnp.sum(p_t * (jnp.log(p_t) - log_p_s)) / s.shape[0]
    return (1.0 - alpha) * hard + alpha * soft * temperature ** 2


if __name__ == "__main__":
    key = jax.random.PRNGKey(0)
    k1, k2, k3 = jax.random.split(key, 3)

    # Case 1: small single-tile shape consistent with the module's (B, C) logits.
    B, C = 8, 4
    student = jax.random.normal(k1, (B, C), dtype=jnp.float32)
    teacher = jax.random.normal(k2, (B, C), dtype=jnp.float32)
    labels = jax.random.bernoulli(k3, 0.5, (B, C)).astype(jnp.float32)

    loss = distillation_loss(student, teacher, labels, temperature=3.0, alpha=0.7)
    jax.block_until_ready(loss)
    ref = _reference(student, teacher, labels, temperature=3.0, alpha=0.7)
    assert jnp.allclose(loss, ref, rtol=1e-5, atol=1e-5), (loss, ref)

    # Case 2: multi-tile path with a masked tail tile (C not a multiple of TILE_C).
    k4, k5, k6 = jax.random.split(jax.random.PRNGKey(1), 3)
    B2, C2 = 16, 320
    s2 = jax.random.normal(k4, (B2, C2), dtype=jnp.float32)
    t2 = jax.random.normal(k5, (B2, C2), dtype=jnp.float32)
    y2 = jax.random.bernoulli(k6, 0.5, (B2, C2)).astype(jnp.float32)
    loss2 = distillation_loss(s2, t2, y2, temperature=3.0, alpha=0.7, max_tile_c=128)
    jax.block_until_ready(loss2)
    ref2 = _reference(s2, t2, y2, temperature=3.0, alpha=0.7)
    assert jnp.allclose(loss2, ref2, rtol=1e-5, atol=1e-5), (loss2, ref2)

    # Case 3: bf16 inputs (half the HBM traffic, the main v5e lever); kernel upcasts
    # internally, so it matches the f32 reference evaluated on the bf16-rounded values.
    s3 = s2.astype(jnp.bfloat16)
    t3 = t2.astype(jnp.bfloat16)
    y3 = y2.astype(jnp.bfloat16)
    loss3 = distillation_loss(s3, t3, y3, temperature=3.0, alpha=0.7, max_tile_c=128)
    jax.block_until_ready(loss3)
    ref3 = _reference(s3.astype(jnp.float32), t3.astype(jnp.float32),
                      y3.astype(jnp.float32), temperature=3.0, alpha=0.7)
    assert jnp.allclose(loss3, ref3, rtol=1e-5, atol=1e-5), (loss3, ref3)

    # Case 4: forced >=2-tile split path (C >= 256 fits one tile but is split so
    # both v7x TensorCores get work); tail tile is padded and masked.
    k7, k8, k9 = jax.random.split(jax.random.PRNGKey(2), 3)
    B4, C4 = 8, 384
    s4 = jax.random.normal(k7, (B4, C4), dtype=jnp.float32)
    t4 = jax.random.normal(k8, (B4, C4), dtype=jnp.float32)
    y4 = jax.random.bernoulli(k9, 0.5, (B4, C4)).astype(jnp.float32)
    loss4 = distillation_loss(s4, t4, y4, temperature=3.0, alpha=0.7)
    jax.block_until_ready(loss4)
    ref4 = _reference(s4, t4, y4, temperature=3.0, alpha=0.7)
    assert jnp.allclose(loss4, ref4, rtol=1e-5, atol=1e-5), (loss4, ref4)

    # Case 5: alpha specialization — soft-only (drops BCE + labels stream) and
    # hard-only (drops KL + teacher stream).
    loss5 = distillation_loss(s2, t2, y2, temperature=3.0, alpha=1.0, max_tile_c=128)
    jax.block_until_ready(loss5)
    ref5 = _reference(s2, t2, y2, temperature=3.0, alpha=1.0)
    assert jnp.allclose(loss5, ref5, rtol=1e-5, atol=1e-5), (loss5, ref5)

    loss6 = distillation_loss(s2, t2, y2, temperature=3.0, alpha=0.0, max_tile_c=128)
    jax.block_until_ready(loss6)
    ref6 = _reference(s2, t2, y2, temperature=3.0, alpha=0.0)
    assert jnp.allclose(loss6, ref6, rtol=1e-5, atol=1e-5), (loss6, ref6)

    print("KERNEL_OK")
</pallas_src>

<mosaic_0001>
module attributes {stable_mosaic.version = 11 : i64} {
  func.func @_distill_partial_kernel(%arg0: i32, %arg1: memref<8x4xf32, #tpu.memory_space<vmem>>, %arg2: memref<8x4xf32, #tpu.memory_space<vmem>>, %arg3: memref<8x4xf32, #tpu.memory_space<vmem>>, %arg4: memref<1x8x128xf32, #tpu.memory_space<vmem>>) attributes {dimension_semantics = [#tpu.dimension_semantics<parallel>], iteration_bounds = array<i64: 1>, scalar_prefetch = 0 : i64, scratch_operands = 0 : i64, tpu.core_type = #tpu.core_type<tc>, window_params = [{transform_indices = @transform_0, window_bounds = array<i64: 8, 4>}, {transform_indices = @transform_1, window_bounds = array<i64: 8, 4>}, {transform_indices = @transform_2, window_bounds = array<i64: 8, 4>}, {transform_indices = @transform_3, window_bounds = array<i64: 1, 8, 128>}]} {
    %c0 = arith.constant 0 : index
    %c0_0 = arith.constant 0 : index
    %0 = vector.load %arg1[%c0, %c0_0] : memref<8x4xf32, #tpu.memory_space<vmem>>, vector<8x4xf32>
    %c0_1 = arith.constant 0 : index
    %c0_2 = arith.constant 0 : index
    %1 = vector.load %arg3[%c0_1, %c0_2] : memref<8x4xf32, #tpu.memory_space<vmem>>, vector<8x4xf32>
    %2 = math.absf %0 : vector<8x4xf32>
    %cst = arith.constant 0.000000e+00 : f32
    %3 = vector.broadcast %cst : f32 to vector<8x4xf32>
    %4 = arith.subf %3, %2 : vector<8x4xf32>
    %5 = math.exp %4 : vector<8x4xf32>
    %6 = math.log1p %5 : vector<8x4xf32>
    %cst_3 = arith.constant 0.000000e+00 : f32
    %7 = vector.broadcast %cst_3 : f32 to vector<8x4xf32>
    %8 = arith.maximumf %0, %7 : vector<8x4xf32>
    %9 = arith.mulf %0, %1 : vector<8x4xf32>
    %10 = arith.subf %8, %9 : vector<8x4xf32>
    %11 = arith.addf %10, %6 : vector<8x4xf32>
    %cst_4 = arith.constant dense<0.000000e+00> : vector<4xf32>
    %12 = vector.multi_reduction <add>, %11, %cst_4 [0] : vector<8x4xf32> to vector<4xf32>
    %13 = vector.shape_cast %12 : vector<4xf32> to vector<1x4xf32>
    %14 = vector.shape_cast %13 : vector<1x4xf32> to vector<1x1x4xf32>
    %cst_5 = arith.constant dense<0.000000e+00> : vector<1xf32>
    %15 = vector.multi_reduction <add>, %14, %cst_5 [1, 2] : vector<1x1x4xf32> to vector<1xf32>
    %16 = vector.shape_cast %15 : vector<1xf32> to vector<1x1x1xf32>
    %17 = vector.extract %16[0, 0, 0] : f32 from vector<1x1x1xf32>
    %c0_6 = arith.constant 0 : index
    %c0_7 = arith.constant 0 : index
    %18 = vector.load %arg2[%c0_6, %c0_7] : memref<8x4xf32, #tpu.memory_space<vmem>>, vector<8x4xf32>
    %cst_8 = arith.constant 0.333333343 : f32
    %19 = vector.broadcast %cst_8 : f32 to vector<8x4xf32>
    %20 = arith.mulf %0, %19 : vector<8x4xf32>
    %cst_9 = arith.constant 0.333333343 : f32
    %21 = vector.broadcast %cst_9 : f32 to vector<8x4xf32>
    %22 = arith.mulf %18, %21 : vector<8x4xf32>
    %cst_10 = arith.constant dense<0xFF800000> : vector<4xf32>
    %23 = vector.multi_reduction <maximumf>, %20, %cst_10 [0] : vector<8x4xf32> to vector<4xf32>
    %24 = vector.shape_cast %23 : vector<4xf32> to vector<1x4xf32>
    %25 = vector.broadcast %24 : vector<1x4xf32> to vector<8x4xf32>
    %26 = arith.subf %20, %25 : vector<8x4xf32>
    %cst_11 = arith.constant dense<0xFF800000> : vector<4xf32>
    %27 = vector.multi_reduction <maximumf>, %22, %cst_11 [0] : vector<8x4xf32> to vector<4xf32>
    %28 = vector.shape_cast %27 : vector<4xf32> to vector<1x4xf32>
    %29 = vector.broadcast %28 : vector<1x4xf32> to vector<8x4xf32>
    %30 = arith.subf %22, %29 : vector<8x4xf32>
    %31 = math.exp %26 : vector<8x4xf32>
    %32 = math.exp %30 : vector<8x4xf32>
    %cst_12 = arith.constant dense<0.000000e+00> : vector<4xf32>
    %33 = vector.multi_reduction <add>, %31, %cst_12 [0] : vector<8x4xf32> to vector<4xf32>
    %34 = vector.shape_cast %33 : vector<4xf32> to vector<1x4xf32>
    %cst_13 = arith.constant dense<0.000000e+00> : vector<4xf32>
    %35 = vector.multi_reduction <add>, %32, %cst_13 [0] : vector<8x4xf32> to vector<4xf32>
    %36 = vector.shape_cast %35 : vector<4xf32> to vector<1x4xf32>
    %37 = arith.subf %30, %26 : vector<8x4xf32>
    %38 = arith.mulf %32, %37 : vector<8x4xf32>
    %cst_14 = arith.constant dense<0.000000e+00> : vector<4xf32>
    %39 = vector.multi_reduction <add>, %38, %cst_14 [0] : vector<8x4xf32> to vector<4xf32>
    %40 = vector.shape_cast %39 : vector<4xf32> to vector<1x4xf32>
    %41 = tpu.reciprocal %36 : vector<1x4xf32> -> vector<1x4xf32>
    %42 = arith.mulf %40, %41 : vector<1x4xf32>
    %43 = math.log %34 : vector<1x4xf32>
    %44 = arith.addf %42, %43 : vector<1x4xf32>
    %45 = math.log %36 : vector<1x4xf32>
    %46 = arith.subf %44, %45 : vector<1x4xf32>
    %47 = vector.shape_cast %46 : vector<1x4xf32> to vector<1x1x4xf32>
    %cst_15 = arith.constant dense<0.000000e+00> : vector<1xf32>
    %48 = vector.multi_reduction <add>, %47, %cst_15 [1, 2] : vector<1x1x4xf32> to vector<1xf32>
    %49 = vector.shape_cast %48 : vector<1xf32> to vector<1x1x1xf32>
    %50 = vector.extract %49[0, 0, 0] : f32 from vector<1x1x1xf32>
    %51 = tpu.iota {dimensions = array<i32: 1>} : vector<1x8x128xi32>
    %c0_i32 = arith.constant 0 : i32
    %52 = vector.broadcast %c0_i32 : i32 to vector<1x8x128xi32>
    %53 = arith.cmpi eq, %51, %52 : vector<1x8x128xi32>
    %54 = vector.broadcast %17 : f32 to vector<1x8x128xf32>
    %55 = vector.broadcast %50 : f32 to vector<1x8x128xf32>
    %56 = arith.select %53, %54, %55 : vector<1x8x128xi1>, vector<1x8x128xf32>
    %c0_16 = arith.constant 0 : index
    %c0_17 = arith.constant 0 : index
    %c0_18 = arith.constant 0 : index
    %57 = vector.load %arg4[%c0_16, %c0_17, %c0_18] : memref<1x8x128xf32, #tpu.memory_space<vmem>>, vector<1x8x128xf32>
    tpu.vector_store %arg4[%c0_16, %c0_17, %c0_18], %56 {strides = array<i32>} : memref<1x8x128xf32, #tpu.memory_space<vmem>>, vector<1x8x128xf32>,
    return
  }
  func.func @transform_0(%arg0: i32) -> (i32, i32) {
    %c0_i32 = arith.constant 0 : i32
    %c0_i32_0 = arith.constant 0 : i32
    return %c0_i32, %arg0 : i32, i32
  }
  func.func @transform_1(%arg0: i32) -> (i32, i32) {
    %c0_i32 = arith.constant 0 : i32
    %c0_i32_0 = arith.constant 0 : i32
    return %c0_i32, %arg0 : i32, i32
  }
  func.func @transform_2(%arg0: i32) -> (i32, i32) {
    %c0_i32 = arith.constant 0 : i32
    %c0_i32_0 = arith.constant 0 : i32
    return %c0_i32, %arg0 : i32, i32
  }
  func.func @transform_3(%arg0: i32) -> (i32, i32, i32) {
    %c0_i32 = arith.constant 0 : i32
    %c0_i32_0 = arith.constant 0 : i32
    %c0_i32_1 = arith.constant 0 : i32
    return %arg0, %c0_i32, %c0_i32_0 : i32, i32, i32
  }
}

</mosaic_0001>

<llo_original>
// kernel: tpu_custom_call.1
$region0: #{tpu_custom_call.1}
  #allocation0 [shape = 'u32[]', space=smem, size = 0x4, offset = 0x4, fixed_abs, tag = 'smem constant byte address 0x4 - core index']
  #allocation1 [shape = 'u32[144,128]{1,0:T(1,128)}', space=vmem, size = 0x12000, scoped, tag = 'internal scratch']
  %s0 = inlined_call_operand.vmem [shape: f32[8,4], index: 0, kind: input, shape index: {}]
  %s1 = inlined_call_operand.vmem [shape: f32[8,4], index: 1, kind: input, shape index: {}]
  %s2 = inlined_call_operand.vmem [shape: f32[8,4], index: 2, kind: input, shape index: {}]
  %s3 = inlined_call_operand.hbm [shape: f32[1,8,128], index: 3, kind: output, shape index: {}]
  %s4 = sld [smem:[#allocation0]]
  $region22: #{tpu_custom_call.1} parent=0
    _
  %s6 = ssub.s32 1, %s4
  %s7 = scalar_select 0, %s6, %s4
  $region1: #{tpu_custom_call.1} parent=0
    #allocation2 [shape = 'u8[4096]{0}', space=vmem, size = 0x1000, scoped, tag = 'output window, operand 0, single buffered']
    #allocation3 [shape = 's32[1]{0}', space=sflag, size = 0x4, scoped, tag = 'scoped memory for tpu_custom_call.1']
    %8 = vsyncpa [#allocation3], 0
    // Predicated region
    $region2: #{tpu_custom_call.1} parent=1 // pred_check
      _
    $region3: #{tpu_custom_call.1} parent=1 // pred_check_branch
      %10 = sbr.rel (0) target = $region5
    $region4: #{tpu_custom_call.1} parent=1 // pred_region
      _
    $region5: #{tpu_custom_call.1} parent=1 // pred_fallthru
      _
    // Predicated region
    $region6: #{tpu_custom_call.1} parent=1 // pred_check
      _
    $region7: #{tpu_custom_call.1} parent=1 // pred_check_branch
      %12 = sbr.rel (0) target = $region9
    $region8: #{tpu_custom_call.1} parent=1 // pred_region
      _
    $region9: #{tpu_custom_call.1} parent=1 // pred_fallthru
      _
    // Predicated region
    $region10: #{tpu_custom_call.1} parent=1 // pred_check
      _
    $region11: #{tpu_custom_call.1} parent=1 // pred_check_branch
      %14 = sbr.rel (0) target = $region13
    $region12: #{tpu_custom_call.1} parent=1 // pred_region
      _
    $region13: #{tpu_custom_call.1} parent=1 // pred_fallthru
      _
    %v15 = vld [vmem:[%s0] sm:$0xff]
    %v16 = vld [vmem:[%s2] sm:$0xff]
    %v17 = vand.u32 2147483647, %v15
    %v18 = vsub.f32 0.0, %v17
    %v19 = vmul.f32 %v18, 1.442695
    %v20 = vpow.pop %v19
    %v21 = vadd.f32 %v20, 1.0
    %v22 = vlog2.pop %v21
    %v23 = vmul.f32 %v22, 0.6931472
    %v24 = vmul.f32 -0.5, %v20
    %v25 = vadd.f32 %v24, 1.0
    %v26 = vmul.f32 %v25, %v20
    %v27 = vand.u32 2147483647, %v20
    %vm28 = vcmp.lt.f32.partialorder %v27, 0.0004427343
    %v29 = vsel %vm28, %v26, %v23
    %v30 = vmax.f32 %v15, 0.0
    %v31 = vmul.f32 %v15, %v16
    %v32 = vsub.f32 %v30, %v31
    %v33 = vadd.f32 %v32, %v29
    %vm34 = vcmask 31744
    %v35 = vsel %vm34, %v33, 0.0
    %v36 = vrot.slane %v35, 4
    %v37 = vadd.f32 %v35, %v36
    %v38 = vrot.slane %v37, 2
    %v39 = vadd.f32 %v37, %v38
    %v40 = vrot.slane %v39, 1
    %v41 = vadd.f32 %v39, %v40
    %vm42 = vcmask 24576
    %v43 = vsel %vm42, %v41, 0.0
    %44 = vadd.xlane.f32.xlu0 %v43
    %v45 = vpop.xlane.xlu0 %44
    %v46 = vrot.slane %v45, 4
    %v47 = vadd.f32 %v45, %v46
    %v48 = vrot.slane %v47, 2
    %v49 = vadd.f32 %v47, %v48
    %v50 = vrot.slane %v49, 1
    %v51 = vadd.f32 %v49, %v50
    %s52 = vtos %v51
    %v53 = vld [vmem:[%s1] sm:$0xff]
    %v54 = vmul.f32 %v15, 0.33333334
    %v55 = vmul.f32 %v53, 0.33333334
    %v56 = vsel %vm34, %v54, -inf
    %v57 = vrot.slane %v56, 4
    %v58 = vmax.f32 %v56, %v57
    %v59 = vrot.slane %v58, 2
    %v60 = vmax.f32 %v58, %v59
    %v61 = vrot.slane %v60, 1
    %v62 = vmax.f32 %v60, %v61
    %v63 = vsub.f32 %v54, %v62
    %v64 = vsel %vm34, %v55, -inf
    %v65 = vrot.slane %v64, 4
    %v66 = vmax.f32 %v64, %v65
    %v67 = vrot.slane %v66, 2
    %v68 = vmax.f32 %v66, %v67
    %v69 = vrot.slane %v68, 1
    %v70 = vmax.f32 %v68, %v69
    %v71 = vsub.f32 %v55, %v70
    %v72 = vmul.f32 %v63, 1.442695
    %v73 = vpow.pop %v72
    %v74 = vmul.f32 %v71, 1.442695
    %v75 = vpow.pop %v74
    %v76 = vsel %vm34, %v73, 0.0
    %v77 = vrot.slane %v76, 4
    %v78 = vadd.f32 %v76, %v77
    %v79 = vrot.slane %v78, 2
    %v80 = vadd.f32 %v78, %v79
    %v81 = vrot.slane %v80, 1
    %v82 = vadd.f32 %v80, %v81
    %v83 = vsel %vm34, %v75, 0.0
    %v84 = vrot.slane %v83, 4
    %v85 = vadd.f32 %v83, %v84
    %v86 = vrot.slane %v85, 2
    %v87 = vadd.f32 %v85, %v86
    %v88 = vrot.slane %v87, 1
    %v89 = vadd.f32 %v87, %v88
    %v90 = vsub.f32 %v71, %v63
    %v91 = vmul.f32 %v75, %v90
    %v92 = vsel %vm34, %v91, 0.0
    %v93 = vrot.slane %v92, 4
    %v94 = vadd.f32 %v92, %v93
    %v95 = vrot.slane %v94, 2
    %v96 = vadd.f32 %v94, %v95
    %v97 = vrot.slane %v96, 1
    %v98 = vadd.f32 %v96, %v97
    %v99 = vrcp.pop %v89
    %v100 = vmul.f32 %v98, %v99
    %v101 = vlog2.pop %v82
    %v102 = vmul.f32 %v101, 0.6931472
    %v103 = vadd.f32 %v100, %v102
    %v104 = vlog2.pop %v89
    %v105 = vmul.f32 %v104, 0.6931472
    %v106 = vsub.f32 %v103, %v105
    %v107 = vsel %vm42, %v106, 0.0
    %108 = vadd.xlane.f32.xlu0 %v107
    %v109 = vpop.xlane.xlu0 %108
    %v110 = vrot.slane %v109, 4
    %v111 = vadd.f32 %v109, %v110
    %v112 = vrot.slane %v111, 2
    %v113 = vadd.f32 %v111, %v112
    %v114 = vrot.slane %v113, 1
    %v115 = vadd.f32 %v113, %v114
    %s116 = vtos %v115
    %v117 = vlaneseq
    %v118 = vshrl.u32 %v117, 7
    %vm119 = vcmp.eq.s32.totalorder %v118, 0
    %v120 = vstv %s52
    %v121 = vstv %s116
    %v122 = vsel %vm119, %v120, %v121
    %123 = vst [vmem:[#allocation2] sm:$0xff] %v122
    // Predicated region
    $region14: #{tpu_custom_call.1} parent=1 // pred_check
      _
    $region15: #{tpu_custom_call.1} parent=1 // pred_check_branch
      %125 = sbr.rel (0) target = $region17
    $region16: #{tpu_custom_call.1} parent=1 // pred_region
      %s127 = ssub.s32 128, 128
      %128 = vsyncadd [#allocation3], %s127
      %s130 = sshll.u32 [#allocation2], 4
      %s131 = int_to_ptr.vmem [resolvable:$true] %s130
      %133 = dma.vmem_to_hbm [thread:$0]  %s131, 128, %s3, [#allocation3]
    $region17: #{tpu_custom_call.1} parent=1 // pred_fallthru
      _
    // Predicated region
    $region18: #{tpu_custom_call.1} parent=1 // pred_check
      _
    $region19: #{tpu_custom_call.1} parent=1 // pred_check_branch
      %135 = sbr.rel (0) target = $region21
    $region20: #{tpu_custom_call.1} parent=1 // pred_region
      %136 = dma.done [#allocation3], 128
    $region21: #{tpu_custom_call.1} parent=1 // pred_fallthru
      _
    %137 = vsyncpa [#allocation3], 1

</llo_original>
